<compile_context>
chip_gen: v5e
topology: v5e:2x2
jax: 0.10.0
libtpu: 0.0.40
codegen_flags: <defaults>
</compile_context>

<pallas_src>
import functools

import jax
import jax.numpy as jnp
from jax.experimental import pallas as pl
from jax.experimental.pallas import tpu as pltpu


def _mlp_kernel(params_ref, x_ref, o_ref):
    """Forward pass for one batch tile, entirely on the VPU.

    params_ref: SMEM (13,) f32 = [w1 (2x3 row-major), b1 (3), w2 (3), b2 (1)]
    x_ref:      VMEM (2, BR, 128)  feature-major; batch = sublanes x lanes
    o_ref:      VMEM (BR, 128)     sublane/lane-dense output tile
    """
    x0 = x_ref[0]  # (BR, 128)
    x1 = x_ref[1]  # (BR, 128)

    # Hoist the 13 scalar params once per grid step.
    w1_00, w1_01, w1_02 = params_ref[0], params_ref[1], params_ref[2]
    w1_10, w1_11, w1_12 = params_ref[3], params_ref[4], params_ref[5]
    b1_0, b1_1, b1_2 = params_ref[6], params_ref[7], params_ref[8]
    w2_0, w2_1, w2_2 = params_ref[9], params_ref[10], params_ref[11]
    b2 = params_ref[12]

    # Hidden width 3, fully unrolled broadcast-FMA chain + ReLU.
    h0 = jnp.maximum(x0 * w1_00 + x1 * w1_10 + b1_0, 0.0)
    h1 = jnp.maximum(x0 * w1_01 + x1 * w1_11 + b1_1, 0.0)
    h2 = jnp.maximum(x0 * w1_02 + x1 * w1_12 + b1_2, 0.0)

    o_ref[...] = (h0 * w2_0 + h1 * w2_1 + h2 * w2_2 + b2).astype(o_ref.dtype)


@functools.partial(jax.jit, static_argnames=("tile_rows", "min_pallas_batch"))
def simple_classifier(x, w1, b1, w2, b2, *, tile_rows=512, min_pallas_batch=1024):
    """x: (B, 2) f32. w1: (2, 3), b1: (3,), w2: (3,), b2: (1,). Returns (B, 1)."""
    if x.ndim != 2 or x.shape[1] != 2:
        raise ValueError(f"expected x of shape (B, 2), got {x.shape}")
    if tile_rows <= 0 or tile_rows % 8 != 0:
        raise ValueError("tile_rows must be a positive multiple of 8")
    B = x.shape[0]
    x = x.astype(jnp.float32)
    w1 = w1.astype(jnp.float32)
    b1 = b1.astype(jnp.float32)
    w2 = w2.astype(jnp.float32)
    b2 = b2.astype(jnp.float32)

    # Small-batch fallback: pallas_call dispatch + pipeline prologue costs more
    # than the whole op at tiny B; let XLA fuse it.
    if B < min_pallas_batch:
        h = jnp.maximum(x @ w1 + b1[None, :], 0.0)
        return h @ w2.reshape(3, 1) + b2[None, :]

    # --- Choose the batch tiling ------------------------------------------
    # rows: batch reshaped to (rows, 128) lanes, rows padded to a multiple of 8.
    rows = pl.cdiv(B, 8 * 128) * 8
    if rows >= 2 * tile_rows:
        block_rows = tile_rows
    elif rows >= 16:
        # Keep >= 2 parallel grid steps so the v7x megacore (2 TCs) can shard
        # the batch; no-op on v5e/v6e.
        block_rows = (((rows + 1) // 2) + 7) // 8 * 8
    else:
        block_rows = rows
    rows = pl.cdiv(rows, block_rows) * block_rows  # whole number of tiles
    bp = rows * 128
    n_tiles = rows // block_rows

    # --- Layout plumbing (fused by XLA inside this jit) --------------------
    # Feature-major, sublane/lane-dense: (2, rows, 128). Padded rows compute
    # garbage (relu(b1)·w2 + b2) and are sliced off at the end.
    x_pad = jnp.pad(x, ((0, bp - B), (0, 0)))
    x_fm = x_pad.T.reshape(2, rows, 128)

    # Flatten the 13 parameter scalars into a single tiny SMEM array.
    params = jnp.concatenate(
        [w1.reshape(-1), b1.reshape(-1), w2.reshape(-1), b2.reshape(-1)]
    )  # (13,)

    out = pl.pallas_call(
        _mlp_kernel,
        out_shape=jax.ShapeDtypeStruct((rows, 128), jnp.float32),
        grid=(n_tiles,),
        in_specs=[
            pl.BlockSpec(memory_space=pltpu.MemorySpace.SMEM),      # params
            pl.BlockSpec((2, block_rows, 128), lambda i: (0, i, 0)),  # x tile
        ],
        out_specs=pl.BlockSpec((block_rows, 128), lambda i: (i, 0)),  # dense out
        compiler_params=pltpu.CompilerParams(
            dimension_semantics=("parallel",)),
    )(params, x_fm)

    return out.reshape(bp, 1)[:B]


def init_params(key):
    # Deterministic init mimicking nn.Linear's uniform(-1/sqrt(fan_in), 1/sqrt(fan_in)).
    k1, k2, k3, k4 = jax.random.split(key, 4)
    bound1 = 1.0 / jnp.sqrt(2.0)
    bound2 = 1.0 / jnp.sqrt(3.0)
    w1 = jax.random.uniform(k1, (2, 3), jnp.float32, -bound1, bound1)  # (in=2, out=3)
    b1 = jax.random.uniform(k2, (3,), jnp.float32, -bound1, bound1)
    w2 = jax.random.uniform(k3, (3,), jnp.float32, -bound2, bound2)    # (in=3, out=1)
    b2 = jax.random.uniform(k4, (1,), jnp.float32, -bound2, bound2)
    return w1, b1, w2, b2


if __name__ == "__main__":
    key = jax.random.PRNGKey(0)
    k_params, k_x = jax.random.split(key)
    w1, b1, w2, b2 = init_params(k_params)

    # batch=10000 exercises the Pallas kernel (2 parallel grid steps, tests the
    # pad path); batch=8 exercises the small-batch XLA fallback.
    for batch in (10000, 8):
        x = jax.random.normal(jax.random.fold_in(k_x, batch), (batch, 2),
                              dtype=jnp.float32)
        logits = jax.block_until_ready(simple_classifier(x, w1, b1, w2, b2))

        # Pure-JAX reference of the same forward pass.
        ref = jnp.maximum(x @ w1 + b1[None, :], 0.0) @ w2[:, None] + b2[None, :]
        assert logits.shape == (batch, 1)
        assert jnp.allclose(logits, ref, atol=1e-5, rtol=1e-5)

    print("KERNEL_OK")
</pallas_src>

<mosaic_0001>
module attributes {stable_mosaic.version = 11 : i64} {
  func.func @_mlp_kernel(%arg0: i32, %arg1: memref<13xf32, #tpu.memory_space<smem>>, %arg2: memref<2x40x128xf32, #tpu.memory_space<vmem>>, %arg3: memref<40x128xf32, #tpu.memory_space<vmem>>) attributes {dimension_semantics = [#tpu.dimension_semantics<parallel>], iteration_bounds = array<i64: 2>, scalar_prefetch = 0 : i64, scratch_operands = 0 : i64, tpu.core_type = #tpu.core_type<tc>, window_params = [{transform_indices = @transform_0, window_bounds = array<i64: 13>}, {transform_indices = @transform_1, window_bounds = array<i64: 2, 40, 128>}, {transform_indices = @transform_2, window_bounds = array<i64: 40, 128>}]} {
    %c0 = arith.constant 0 : index
    %c0_0 = arith.constant 0 : index
    %c0_1 = arith.constant 0 : index
    %0 = vector.load %arg2[%c0, %c0_0, %c0_1] : memref<2x40x128xf32, #tpu.memory_space<vmem>>, vector<1x40x128xf32>
    %1 = vector.shape_cast %0 : vector<1x40x128xf32> to vector<40x128xf32>
    %c1 = arith.constant 1 : index
    %c0_2 = arith.constant 0 : index
    %c0_3 = arith.constant 0 : index
    %2 = vector.load %arg2[%c1, %c0_2, %c0_3] : memref<2x40x128xf32, #tpu.memory_space<vmem>>, vector<1x40x128xf32>
    %3 = vector.shape_cast %2 : vector<1x40x128xf32> to vector<40x128xf32>
    %c0_4 = arith.constant 0 : index
    %4 = memref.load %arg1[%c0_4] : memref<13xf32, #tpu.memory_space<smem>>
    %c1_5 = arith.constant 1 : index
    %5 = memref.load %arg1[%c1_5] : memref<13xf32, #tpu.memory_space<smem>>
    %c2 = arith.constant 2 : index
    %6 = memref.load %arg1[%c2] : memref<13xf32, #tpu.memory_space<smem>>
    %c3 = arith.constant 3 : index
    %7 = memref.load %arg1[%c3] : memref<13xf32, #tpu.memory_space<smem>>
    %c4 = arith.constant 4 : index
    %8 = memref.load %arg1[%c4] : memref<13xf32, #tpu.memory_space<smem>>
    %c5 = arith.constant 5 : index
    %9 = memref.load %arg1[%c5] : memref<13xf32, #tpu.memory_space<smem>>
    %c6 = arith.constant 6 : index
    %10 = memref.load %arg1[%c6] : memref<13xf32, #tpu.memory_space<smem>>
    %c7 = arith.constant 7 : index
    %11 = memref.load %arg1[%c7] : memref<13xf32, #tpu.memory_space<smem>>
    %c8 = arith.constant 8 : index
    %12 = memref.load %arg1[%c8] : memref<13xf32, #tpu.memory_space<smem>>
    %c9 = arith.constant 9 : index
    %13 = memref.load %arg1[%c9] : memref<13xf32, #tpu.memory_space<smem>>
    %c10 = arith.constant 10 : index
    %14 = memref.load %arg1[%c10] : memref<13xf32, #tpu.memory_space<smem>>
    %c11 = arith.constant 11 : index
    %15 = memref.load %arg1[%c11] : memref<13xf32, #tpu.memory_space<smem>>
    %c12 = arith.constant 12 : index
    %16 = memref.load %arg1[%c12] : memref<13xf32, #tpu.memory_space<smem>>
    %17 = vector.broadcast %4 : f32 to vector<40x128xf32>
    %18 = arith.mulf %1, %17 : vector<40x128xf32>
    %19 = vector.broadcast %7 : f32 to vector<40x128xf32>
    %20 = arith.mulf %3, %19 : vector<40x128xf32>
    %21 = arith.addf %18, %20 : vector<40x128xf32>
    %22 = vector.broadcast %10 : f32 to vector<40x128xf32>
    %23 = arith.addf %21, %22 : vector<40x128xf32>
    %cst = arith.constant 0.000000e+00 : f32
    %24 = vector.broadcast %cst : f32 to vector<40x128xf32>
    %25 = arith.maximumf %23, %24 : vector<40x128xf32>
    %26 = vector.broadcast %5 : f32 to vector<40x128xf32>
    %27 = arith.mulf %1, %26 : vector<40x128xf32>
    %28 = vector.broadcast %8 : f32 to vector<40x128xf32>
    %29 = arith.mulf %3, %28 : vector<40x128xf32>
    %30 = arith.addf %27, %29 : vector<40x128xf32>
    %31 = vector.broadcast %11 : f32 to vector<40x128xf32>
    %32 = arith.addf %30, %31 : vector<40x128xf32>
    %cst_6 = arith.constant 0.000000e+00 : f32
    %33 = vector.broadcast %cst_6 : f32 to vector<40x128xf32>
    %34 = arith.maximumf %32, %33 : vector<40x128xf32>
    %35 = vector.broadcast %6 : f32 to vector<40x128xf32>
    %36 = arith.mulf %1, %35 : vector<40x128xf32>
    %37 = vector.broadcast %9 : f32 to vector<40x128xf32>
    %38 = arith.mulf %3, %37 : vector<40x128xf32>
    %39 = arith.addf %36, %38 : vector<40x128xf32>
    %40 = vector.broadcast %12 : f32 to vector<40x128xf32>
    %41 = arith.addf %39, %40 : vector<40x128xf32>
    %cst_7 = arith.constant 0.000000e+00 : f32
    %42 = vector.broadcast %cst_7 : f32 to vector<40x128xf32>
    %43 = arith.maximumf %41, %42 : vector<40x128xf32>
    %44 = vector.broadcast %13 : f32 to vector<40x128xf32>
    %45 = arith.mulf %25, %44 : vector<40x128xf32>
    %46 = vector.broadcast %14 : f32 to vector<40x128xf32>
    %47 = arith.mulf %34, %46 : vector<40x128xf32>
    %48 = arith.addf %45, %47 : vector<40x128xf32>
    %49 = vector.broadcast %15 : f32 to vector<40x128xf32>
    %50 = arith.mulf %43, %49 : vector<40x128xf32>
    %51 = arith.addf %48, %50 : vector<40x128xf32>
    %52 = vector.broadcast %16 : f32 to vector<40x128xf32>
    %53 = arith.addf %51, %52 : vector<40x128xf32>
    %c0_8 = arith.constant 0 : index
    %c0_9 = arith.constant 0 : index
    %54 = vector.load %arg3[%c0_8, %c0_9] : memref<40x128xf32, #tpu.memory_space<vmem>>, vector<40x128xf32>
    tpu.vector_store %arg3[%c0_8, %c0_9], %53 {strides = array<i32>} : memref<40x128xf32, #tpu.memory_space<vmem>>, vector<40x128xf32>,
    return
  }
  func.func @transform_0(%arg0: i32) -> i32 {
    %c0_i32 = arith.constant 0 : i32
    %c0_i32_0 = arith.constant 0 : i32
    return %c0_i32 : i32
  }
  func.func @transform_1(%arg0: i32) -> (i32, i32, i32) {
    %c0_i32 = arith.constant 0 : i32
    %c0_i32_0 = arith.constant 0 : i32
    %c0_i32_1 = arith.constant 0 : i32
    return %c0_i32, %arg0, %c0_i32_0 : i32, i32, i32
  }
  func.func @transform_2(%arg0: i32) -> (i32, i32) {
    %c0_i32 = arith.constant 0 : i32
    %c0_i32_0 = arith.constant 0 : i32
    return %arg0, %c0_i32 : i32, i32
  }
}

</mosaic_0001>

<llo_original>
// kernel: simple_classifier.1
$region0: #{simple_classifier.1}
  #allocation0 [shape = 'u32[]', space=smem, size = 0x4, offset = 0x4, fixed_abs, tag = 'smem constant byte address 0x4 - core index']
  #allocation1 [shape = 'u32[72,128]{1,0:T(1,128)}', space=vmem, size = 0x9000, scoped, tag = 'internal scratch']
  %s0 = inlined_call_operand.vmem [shape: f32[13], index: 0, kind: input, shape index: {}]
  %s1 = inlined_call_operand.vmem [shape: f32[2,80,128], index: 1, kind: input, shape index: {}]
  %s2 = inlined_call_operand.vmem [shape: f32[80,128], index: 2, kind: output, shape index: {}]
  %s3 = sld [smem:[#allocation0]]
  $region83: #{simple_classifier.1} parent=0
    _
  %s5 = ssub.s32 1, %s3
  %s6 = scalar_select 0, %s5, %s3
  $region1: #{simple_classifier.1} parent=0
    #allocation2 [shape = 'u8[512]{0}', space=smem, size = 0x200, scoped, tag = 'input window, operand 0, single buffered']
    #allocation3 [shape = 's32[2]{0}', space=sflag, size = 0x8, scoped, tag = 'scoped memory for simple_classifier.1']
    #allocation4 [shape = 'u8[81920]{0}', space=vmem, size = 0x14000, scoped, tag = 'input window, operand 1']
    %7 = vsyncpa [#allocation3], 0
    loop: start=0, step=1, limit=4
    $region2: #{simple_classifier.1} parent=1 // loop_pre_header
      _
    $region3: #{simple_classifier.1} parent=1 // loop_header
      %s9 = sphi 0, %s13
      %p10 = scmp.ge.s32.totalorder %s9, 4
      %s17 = sphi 0, %s17
      %s19 = sphi 0, %s17
      %s20 = sphi 0, %s19
      %s34 = sphi 0, %s20
      %s40 = sphi 0, %s42
      %s43 = sphi 0, %s40
      %s44 = sphi 0, %s43
      %s60 = sphi 0, %s44
      %s66 = sphi 0, %s68
      %s69 = sphi 0, %s66
      %s70 = sphi 0, %s69
      %s86 = sphi 0, %s70
    $region4: #{simple_classifier.1} parent=1 // loop_header_branch
      %12 = sbr.rel (%p10) target = $region8
    $region5: #{simple_classifier.1} parent=1 // loop_body
      %s14 = ssub.s32 %s9, 1
      %s15 = ssub.s32 %s9, 2
      %s16 = sadd.s32 %s9, 1
      %s18 = sadd.s32 %s17, 1
      %p21 = scmp.eq.s32.totalorder %s9, 1
      %p22 = scmp.ne.s32.totalorder %s17, %s19
      %p23 = scmp.eq.s32.totalorder %s9, 0
      %p24 = por %p22, %p23
      %p25 = scmp.ne.s32.totalorder %s17, %s19
      %p26 = scmp.eq.s32.totalorder %s14, 1
      %p27 = por %p25, %p26
      %p28 = scmp.ne.s32.totalorder %s19, %s20
      %p29 = scmp.eq.s32.totalorder %s14, 0
      %p30 = por %p28, %p29
      %p31 = scmp.ne.s32.totalorder %s19, %s20
      %p32 = scmp.eq.s32.totalorder %s15, 1
      %p33 = por %p31, %p32
      %p35 = scmp.ne.s32.totalorder %s20, %s34
      %p36 = scmp.eq.s32.totalorder %s15, 0
      %p37 = por %p35, %p36
      %s38 = ssub.s32 %s9, %s16
      %p39 = scmp.eq.s32.totalorder %s38, 0
      %s41 = sadd.s32 %s40, 1
      %s42 = scalar_select %p39, %s40, %s41
      %p45 = pneg %p39
      %p46 = scmp.eq.s32.totalorder %s9, 1
      %p47 = por %p45, %p46
      %p48 = scmp.ne.s32.totalorder %s40, %s43
      %p49 = scmp.eq.s32.totalorder %s9, 0
      %p50 = por %p48, %p49
      %p51 = scmp.ne.s32.totalorder %s40, %s43
      %p52 = scmp.eq.s32.totalorder %s14, 1
      %p53 = por %p51, %p52
      %p54 = scmp.ne.s32.totalorder %s43, %s44
      %p55 = scmp.eq.s32.totalorder %s14, 0
      %p56 = por %p54, %p55
      %p57 = scmp.ne.s32.totalorder %s43, %s44
      %p58 = scmp.eq.s32.totalorder %s15, 1
      %p59 = por %p57, %p58
      %p61 = scmp.ne.s32.totalorder %s44, %s60
      %p62 = scmp.eq.s32.totalorder %s15, 0
      %p63 = por %p61, %p62
      %s64 = ssub.s32 %s9, %s16
      %p65 = scmp.eq.s32.totalorder %s64, 0
      %s67 = sadd.s32 %s66, 1
      %s68 = scalar_select %p65, %s66, %s67
      %p71 = pneg %p65
      %p72 = scmp.eq.s32.totalorder %s9, 1
      %p73 = por %p71, %p72
      %p74 = scmp.ne.s32.totalorder %s66, %s69
      %p75 = scmp.eq.s32.totalorder %s9, 0
      %p76 = por %p74, %p75
      %p77 = scmp.ne.s32.totalorder %s66, %s69
      %p78 = scmp.eq.s32.totalorder %s14, 1
      %p79 = por %p77, %p78
      %p80 = scmp.ne.s32.totalorder %s69, %s70
      %p81 = scmp.eq.s32.totalorder %s14, 0
      %p82 = por %p80, %p81
      %p83 = scmp.ne.s32.totalorder %s69, %s70
      %p84 = scmp.eq.s32.totalorder %s15, 1
      %p85 = por %p83, %p84
      %p87 = scmp.ne.s32.totalorder %s70, %s86
      %p88 = scmp.eq.s32.totalorder %s15, 0
      %p89 = por %p87, %p88
      %p90 = scmp.le.s32.totalorder 1, %s9
      %p91 = scmp.lt.s32.totalorder %s9, 3
      %p92 = pnand %p90, %p91
      %p93 = pneg %p92
      // Predicated region
      $region9: #{simple_classifier.1} parent=5 // pred_check
        _
      $region10: #{simple_classifier.1} parent=5 // pred_check_branch
        %95 = sbr.rel (%p92) target = $region12
      $region11: #{simple_classifier.1} parent=5 // pred_region
        %s96 = ssub.s32 %s9, 1
        // Predicated region
        $region13: #{simple_classifier.1} parent=11 // pred_check
          %p97 = pneg %p30
        $region14: #{simple_classifier.1} parent=11 // pred_check_branch
          %99 = sbr.rel (%p97) target = $region16
        $region15: #{simple_classifier.1} parent=11 // pred_region
          %101 = vsyncadd [#allocation3], 0
          %s103 = sshll.u32 %s0, 4
          %s104 = int_to_ptr.vmem [resolvable:$true] %s103
          %106 = dma.vmem_to_smem %s104, 16, [#allocation2], [#allocation3]
        $region16: #{simple_classifier.1} parent=11 // pred_fallthru
          _
      $region12: #{simple_classifier.1} parent=5 // pred_fallthru
        _
      %p107 = scmp.lt.s32.totalorder %s9, 2
      // Predicated region
      $region17: #{simple_classifier.1} parent=5 // pred_check
        %p108 = pneg %p107
      $region18: #{simple_classifier.1} parent=5 // pred_check_branch
        %110 = sbr.rel (%p108) target = $region20
      $region19: #{simple_classifier.1} parent=5 // pred_region
        // Predicated region
        $region21: #{simple_classifier.1} parent=19 // pred_check
          %p111 = pneg %p50
        $region22: #{simple_classifier.1} parent=19 // pred_check_branch
          %113 = sbr.rel (%p111) target = $region24
        $region23: #{simple_classifier.1} parent=19 // pred_region
          %s114 = sand.u32 %s40, 1
          %s115 = sand.u32 %s40, 1
          %s116 = smul.addr %s115, 80
          %s117 = scalar_lea.vmem [#allocation4], %s116
          %s118 = smul.u32 5, %s9
          %s119 = smul.addr %s118, 8
          %s120 = scalar_lea.vmem %s1, %s119
          // Predicated region
          $region25: #{simple_classifier.1} parent=23 // pred_check
            _
          $region26: #{simple_classifier.1} parent=23 // pred_check_branch
            %122 = sbr.rel (0) target = $region28
          $region27: #{simple_classifier.1} parent=23 // pred_region
            // Predicated region
            $region29: #{simple_classifier.1} parent=27 // pred_check
              _
            $region30: #{simple_classifier.1} parent=27 // pred_check_branch
              %124 = sbr.rel (0) target = $region32
            $region31: #{simple_classifier.1} parent=27 // pred_region
              // Predicated region
              $region44: #{simple_classifier.1} parent=31 // pred_check
                _
              $region45: #{simple_classifier.1} parent=31 // pred_check_branch
                %158 = sbr.rel (0) target = $region47
              $region46: #{simple_classifier.1} parent=31 // pred_region
                loop: start=0, step=1, limit=1
                $region48: #{simple_classifier.1} parent=46 // loop_pre_header
                  _
                $region49: #{simple_classifier.1} parent=46 // loop_header
                  %s160 = sphi 0, %s164
                  %p161 = scmp.ge.s32.totalorder %s160, 1
                  %s165 = sphi %s120, %s120
                  %s166 = sphi %s117, %s117
                $region50: #{simple_classifier.1} parent=46 // loop_header_branch
                  %163 = sbr.rel (%p161) target = $region54
                $region51: #{simple_classifier.1} parent=46 // loop_body
                  %v167 = vld [vmem:[%s165] sm:$0xff]
                  %168 = vst [vmem:[%s166] sm:$0xff] %v167
                  %v169 = vld [vmem:[%s165 + $0x8] sm:$0xff]
                  %170 = vst [vmem:[%s166 + $0x8] sm:$0xff] %v169
                  %v171 = vld [vmem:[%s165 + $0x10] sm:$0xff]
                  %172 = vst [vmem:[%s166 + $0x10] sm:$0xff] %v171
                  %v173 = vld [vmem:[%s165 + $0x18] sm:$0xff]
                  %174 = vst [vmem:[%s166 + $0x18] sm:$0xff] %v173
                  %v175 = vld [vmem:[%s165 + $0x20] sm:$0xff]
                  %176 = vst [vmem:[%s166 + $0x20] sm:$0xff] %v175
                  %v177 = vld [vmem:[%s165 + $0x50] sm:$0xff]
                  %178 = vst [vmem:[%s166 + $0x28] sm:$0xff] %v177
                  %v179 = vld [vmem:[%s165 + $0x58] sm:$0xff]
                  %180 = vst [vmem:[%s166 + $0x30] sm:$0xff] %v179
                  %v181 = vld [vmem:[%s165 + $0x60] sm:$0xff]
                  %182 = vst [vmem:[%s166 + $0x38] sm:$0xff] %v181
                  %v183 = vld [vmem:[%s165 + $0x68] sm:$0xff]
                  %184 = vst [vmem:[%s166 + $0x40] sm:$0xff] %v183
                  %v185 = vld [vmem:[%s165 + $0x70] sm:$0xff]
                  %186 = vst [vmem:[%s166 + $0x48] sm:$0xff] %v185
                $region52: #{simple_classifier.1} parent=46 // loop_footer
                  %s164 = sadd.s32 1, %s160
                $region53: #{simple_classifier.1} parent=46 // loop_footer_branch
                  %159 = sbr.rel target = $region49
                $region54: #{simple_classifier.1} parent=46 // loop_exit
                  _
              $region47: #{simple_classifier.1} parent=31 // pred_fallthru
                _
              // Predicated region
              $region55: #{simple_classifier.1} parent=31 // pred_check
                _
              $region56: #{simple_classifier.1} parent=31 // pred_check_branch
                %188 = sbr.rel target = $region58
              $region57: #{simple_classifier.1} parent=31 // pred_region
                _
              $region58: #{simple_classifier.1} parent=31 // pred_fallthru
                _
            $region32: #{simple_classifier.1} parent=27 // pred_fallthru
              _
            // Predicated region
            $region33: #{simple_classifier.1} parent=27 // pred_check
              _
            $region34: #{simple_classifier.1} parent=27 // pred_check_branch
              %126 = sbr.rel target = $region36
            $region35: #{simple_classifier.1} parent=27 // pred_region
              %s128 = ssub.s32 256, 1
              loop: start=0, step=1, limit=1
              $region37: #{simple_classifier.1} parent=35 // loop_pre_header
                _
              $region38: #{simple_classifier.1} parent=35 // loop_header
                %s130 = sphi 0, %s134
                %p131 = scmp.ge.s32.totalorder %s130, 1
                %s135 = sphi %s120, %s120
                %s136 = sphi %s117, %s117
              $region39: #{simple_classifier.1} parent=35 // loop_header_branch
                %133 = sbr.rel (%p131) target = $region43
              $region40: #{simple_classifier.1} parent=35 // loop_body
                %v137 = vld [vmem:[%s135] sm:%s128]
                %138 = vst [vmem:[%s136] sm:%s128] %v137
                %v139 = vld [vmem:[%s135 + $0x8] sm:%s128]
                %140 = vst [vmem:[%s136 + $0x8] sm:%s128] %v139
                %v141 = vld [vmem:[%s135 + $0x10] sm:%s128]
                %142 = vst [vmem:[%s136 + $0x10] sm:%s128] %v141
                %v143 = vld [vmem:[%s135 + $0x18] sm:%s128]
                %144 = vst [vmem:[%s136 + $0x18] sm:%s128] %v143
                %v145 = vld [vmem:[%s135 + $0x20] sm:%s128]
                %146 = vst [vmem:[%s136 + $0x20] sm:%s128] %v145
                %v147 = vld [vmem:[%s135 + $0x50] sm:%s128]
                %148 = vst [vmem:[%s136 + $0x28] sm:%s128] %v147
                %v149 = vld [vmem:[%s135 + $0x58] sm:%s128]
                %150 = vst [vmem:[%s136 + $0x30] sm:%s128] %v149
                %v151 = vld [vmem:[%s135 + $0x60] sm:%s128]
                %152 = vst [vmem:[%s136 + $0x38] sm:%s128] %v151
                %v153 = vld [vmem:[%s135 + $0x68] sm:%s128]
                %154 = vst [vmem:[%s136 + $0x40] sm:%s128] %v153
                %v155 = vld [vmem:[%s135 + $0x70] sm:%s128]
                %156 = vst [vmem:[%s136 + $0x48] sm:%s128] %v155
              $region41: #{simple_classifier.1} parent=35 // loop_footer
                %s134 = sadd.s32 1, %s130
              $region42: #{simple_classifier.1} parent=35 // loop_footer_branch
                %129 = sbr.rel target = $region38
              $region43: #{simple_classifier.1} parent=35 // loop_exit
                _
            $region36: #{simple_classifier.1} parent=27 // pred_fallthru
              _
          $region28: #{simple_classifier.1} parent=23 // pred_fallthru
            _
          %189 = vnop
        $region24: #{simple_classifier.1} parent=19 // pred_fallthru
          _
      $region20: #{simple_classifier.1} parent=5 // pred_fallthru
        _
      %p190 = scmp.le.s32.totalorder 1, %s9
      %p191 = scmp.lt.s32.totalorder %s9, 3
      %p192 = pnand %p190, %p191
      %p193 = pneg %p192
      // Predicated region
      $region59: #{simple_classifier.1} parent=5 // pred_check
        _
      $region60: #{simple_classifier.1} parent=5 // pred_check_branch
        %195 = sbr.rel (%p192) target = $region62
      $region61: #{simple_classifier.1} parent=5 // pred_region
        %s196 = ssub.s32 %s9, 1
        // Predicated region
        $region63: #{simple_classifier.1} parent=61 // pred_check
          %p197 = pneg %p30
        $region64: #{simple_classifier.1} parent=61 // pred_check_branch
          %199 = sbr.rel (%p197) target = $region66
        $region65: #{simple_classifier.1} parent=61 // pred_region
          %201 = dma.done [#allocation3], 16
        $region66: #{simple_classifier.1} parent=61 // pred_fallthru
          _
        %s202 = sand.u32 %s43, 1
        %s203 = sand.u32 %s43, 1
        %s204 = smul.addr %s203, 80
        %s205 = scalar_lea.vmem [#allocation4], %s204
        // Predicated region
        $region67: #{simple_classifier.1} parent=61 // pred_check
          %p206 = pneg %p56
        $region68: #{simple_classifier.1} parent=61 // pred_check_branch
          %208 = sbr.rel (%p206) target = $region70
        $region69: #{simple_classifier.1} parent=61 // pred_region
          _
        $region70: #{simple_classifier.1} parent=61 // pred_fallthru
          _
        %209 = sfence
        %p210 = pneg %p30
        %p211 = pneg %p27
        %s212 = sand.u32 %s43, 1
        %s213 = sand.u32 %s43, 1
        %s214 = smul.addr %s213, 80
        %s215 = scalar_lea.vmem [#allocation4], %s214
        %p216 = pneg %p56
        %p217 = pneg %p53
        %p218 = pneg %p82
        %p219 = pneg %p79
        %s220 = smul.u32 5, %s14
        %p221 = scmp.lt.s32.totalorder %s220, 9
        %s222 = scalar_select %p221, %s220, 9
        %s223 = smul.addr %s222, 8
        %s224 = scalar_lea.vmem %s2, %s223
        %s225 = smul.u32 5, %s14
        %s226 = smul.u32 5, %s14
        %p227 = scmp.lt.s32.totalorder %s226, 9
        %s228 = scalar_select %p227, %s226, 9
        %s229 = smul.addr %s228, 8
        %s230 = scalar_lea.vmem %s2, %s229
        %s231 = smul.u32 5, %s14
        %v232 = vld [vmem:[%s205] sm:$0xff]
        %v233 = vld [vmem:[%s205 + $0x8] sm:$0xff]
        %v234 = vld [vmem:[%s205 + $0x10] sm:$0xff]
        %v235 = vld [vmem:[%s205 + $0x18] sm:$0xff]
        %v236 = vld [vmem:[%s205 + $0x20] sm:$0xff]
        %s237 = scalar_lea.vmem %s205, 40 [#allocation4]
        %v238 = vld [vmem:[%s237] sm:$0xff]
        %v239 = vld [vmem:[%s237 + $0x8] sm:$0xff]
        %v240 = vld [vmem:[%s237 + $0x10] sm:$0xff]
        %v241 = vld [vmem:[%s237 + $0x18] sm:$0xff]
        %v242 = vld [vmem:[%s237 + $0x20] sm:$0xff]
        %s243 = sld [smem:[#allocation2]]
        %s244 = sld [smem:[#allocation2 + $0x1]]
        %s245 = sld [smem:[#allocation2 + $0x2]]
        %s246 = sld [smem:[#allocation2 + $0x3]]
        %s247 = sld [smem:[#allocation2 + $0x4]]
        %s248 = sld [smem:[#allocation2 + $0x5]]
        %s249 = sld [smem:[#allocation2 + $0x6]]
        %s250 = sld [smem:[#allocation2 + $0x7]]
        %s251 = sld [smem:[#allocation2 + $0x8]]
        %s252 = sld [smem:[#allocation2 + $0x9]]
        %s253 = sld [smem:[#allocation2 + $0xa]]
        %s254 = sld [smem:[#allocation2 + $0xb]]
        %s255 = sld [smem:[#allocation2 + $0xc]]
        %v256 = vstv %s243
        %v257 = vmul.f32 %v232, %v256
        %v258 = vmul.f32 %v233, %v256
        %v259 = vmul.f32 %v234, %v256
        %v260 = vmul.f32 %v235, %v256
        %v261 = vmul.f32 %v236, %v256
        %v262 = vstv %s246
        %v263 = vmul.f32 %v238, %v262
        %v264 = vmul.f32 %v239, %v262
        %v265 = vmul.f32 %v240, %v262
        %v266 = vmul.f32 %v241, %v262
        %v267 = vmul.f32 %v242, %v262
        %v268 = vadd.f32 %v257, %v263
        %v269 = vadd.f32 %v258, %v264
        %v270 = vadd.f32 %v259, %v265
        %v271 = vadd.f32 %v260, %v266
        %v272 = vadd.f32 %v261, %v267
        %v273 = vstv %s249
        %v274 = vadd.f32 %v268, %v273
        %v275 = vadd.f32 %v269, %v273
        %v276 = vadd.f32 %v270, %v273
        %v277 = vadd.f32 %v271, %v273
        %v278 = vadd.f32 %v272, %v273
        %v279 = vmax.f32 %v274, 0.0
        %v280 = vmax.f32 %v275, 0.0
        %v281 = vmax.f32 %v276, 0.0
        %v282 = vmax.f32 %v277, 0.0
        %v283 = vmax.f32 %v278, 0.0
        %v284 = vstv %s244
        %v285 = vmul.f32 %v232, %v284
        %v286 = vmul.f32 %v233, %v284
        %v287 = vmul.f32 %v234, %v284
        %v288 = vmul.f32 %v235, %v284
        %v289 = vmul.f32 %v236, %v284
        %v290 = vstv %s247
        %v291 = vmul.f32 %v238, %v290
        %v292 = vmul.f32 %v239, %v290
        %v293 = vmul.f32 %v240, %v290
        %v294 = vmul.f32 %v241, %v290
        %v295 = vmul.f32 %v242, %v290
        %v296 = vadd.f32 %v285, %v291
        %v297 = vadd.f32 %v286, %v292
        %v298 = vadd.f32 %v287, %v293
        %v299 = vadd.f32 %v288, %v294
        %v300 = vadd.f32 %v289, %v295
        %v301 = vstv %s250
        %v302 = vadd.f32 %v296, %v301
        %v303 = vadd.f32 %v297, %v301
        %v304 = vadd.f32 %v298, %v301
        %v305 = vadd.f32 %v299, %v301
        %v306 = vadd.f32 %v300, %v301
        %v307 = vmax.f32 %v302, 0.0
        %v308 = vmax.f32 %v303, 0.0
        %v309 = vmax.f32 %v304, 0.0
        %v310 = vmax.f32 %v305, 0.0
        %v311 = vmax.f32 %v306, 0.0
        %v312 = vstv %s245
        %v313 = vmul.f32 %v232, %v312
        %v314 = vmul.f32 %v233, %v312
        %v315 = vmul.f32 %v234, %v312
        %v316 = vmul.f32 %v235, %v312
        %v317 = vmul.f32 %v236, %v312
        %v318 = vstv %s248
        %v319 = vmul.f32 %v238, %v318
        %v320 = vmul.f32 %v239, %v318
        %v321 = vmul.f32 %v240, %v318
        %v322 = vmul.f32 %v241, %v318
        %v323 = vmul.f32 %v242, %v318
        %v324 = vadd.f32 %v313, %v319
        %v325 = vadd.f32 %v314, %v320
        %v326 = vadd.f32 %v315, %v321
        %v327 = vadd.f32 %v316, %v322
        %v328 = vadd.f32 %v317, %v323
        %v329 = vstv %s251
        %v330 = vadd.f32 %v324, %v329
        %v331 = vadd.f32 %v325, %v329
        %v332 = vadd.f32 %v326, %v329
        %v333 = vadd.f32 %v327, %v329
        %v334 = vadd.f32 %v328, %v329
        %v335 = vmax.f32 %v330, 0.0
        %v336 = vmax.f32 %v331, 0.0
        %v337 = vmax.f32 %v332, 0.0
        %v338 = vmax.f32 %v333, 0.0
        %v339 = vmax.f32 %v334, 0.0
        %v340 = vstv %s252
        %v341 = vmul.f32 %v279, %v340
        %v342 = vmul.f32 %v280, %v340
        %v343 = vmul.f32 %v281, %v340
        %v344 = vmul.f32 %v282, %v340
        %v345 = vmul.f32 %v283, %v340
        %v346 = vstv %s253
        %v347 = vmul.f32 %v307, %v346
        %v348 = vmul.f32 %v308, %v346
        %v349 = vmul.f32 %v309, %v346
        %v350 = vmul.f32 %v310, %v346
        %v351 = vmul.f32 %v311, %v346
        %v352 = vadd.f32 %v341, %v347
        %v353 = vadd.f32 %v342, %v348
        %v354 = vadd.f32 %v343, %v349
        %v355 = vadd.f32 %v344, %v350
        %v356 = vadd.f32 %v345, %v351
        %v357 = vstv %s254
        %v358 = vmul.f32 %v335, %v357
        %v359 = vmul.f32 %v336, %v357
        %v360 = vmul.f32 %v337, %v357
        %v361 = vmul.f32 %v338, %v357
        %v362 = vmul.f32 %v339, %v357
        %v363 = vadd.f32 %v352, %v358
        %v364 = vadd.f32 %v353, %v359
        %v365 = vadd.f32 %v354, %v360
        %v366 = vadd.f32 %v355, %v361
        %v367 = vadd.f32 %v356, %v362
        %v368 = vstv %s255
        %v369 = vadd.f32 %v363, %v368
        %v370 = vadd.f32 %v364, %v368
        %v371 = vadd.f32 %v365, %v368
        %v372 = vadd.f32 %v366, %v368
        %v373 = vadd.f32 %v367, %v368
        %374 = vst [vmem:[%s230] sm:$0xff] %v369
        %375 = vst [vmem:[%s230 + $0x8] sm:$0xff] %v370
        %376 = vst [vmem:[%s230 + $0x10] sm:$0xff] %v371
        %377 = vst [vmem:[%s230 + $0x18] sm:$0xff] %v372
        %378 = vst [vmem:[%s230 + $0x20] sm:$0xff] %v373
        %s379 = smul.u32 5, %s14
        %p380 = scmp.lt.s32.totalorder %s379, 9
        %s381 = scalar_select %p380, %s379, 9
        %s382 = smul.addr %s381, 8
        %s383 = scalar_lea.vmem %s2, %s382
        // Predicated region
        $region71: #{simple_classifier.1} parent=61 // pred_check
          %p384 = pneg %p79
        $region72: #{simple_classifier.1} parent=61 // pred_check_branch
          %386 = sbr.rel (%p384) target = $region74
        $region73: #{simple_classifier.1} parent=61 // pred_region
          %s387 = smul.u32 5, %s14
        $region74: #{simple_classifier.1} parent=61 // pred_fallthru
          _
      $region62: #{simple_classifier.1} parent=5 // pred_fallthru
        _
      %p388 = scmp.le.s32.totalorder 2, %s9
      // Predicated region
      $region75: #{simple_classifier.1} parent=5 // pred_check
        %p389 = pneg %p388
      $region76: #{simple_classifier.1} parent=5 // pred_check_branch
        %391 = sbr.rel (%p389) target = $region78
      $region77: #{simple_classifier.1} parent=5 // pred_region
        %s392 = ssub.s32 %s9, 2
        // Predicated region
        $region79: #{simple_classifier.1} parent=77 // pred_check
          %p393 = pneg %p85
        $region80: #{simple_classifier.1} parent=77 // pred_check_branch
          %395 = sbr.rel (%p393) target = $region82
        $region81: #{simple_classifier.1} parent=77 // pred_region
          %s396 = smul.u32 5, %s15
          %p397 = scmp.lt.s32.totalorder %s396, 9
          %s398 = scalar_select %p397, %s396, 9
          %s399 = smul.addr %s398, 8
          %s400 = scalar_lea.vmem %s2, %s399
        $region82: #{simple_classifier.1} parent=77 // pred_fallthru
          _
      $region78: #{simple_classifier.1} parent=5 // pred_fallthru
        _
    $region6: #{simple_classifier.1} parent=1 // loop_footer
      %s13 = sadd.s32 1, %s9
    $region7: #{simple_classifier.1} parent=1 // loop_footer_branch
      %8 = sbr.rel target = $region3
    $region8: #{simple_classifier.1} parent=1 // loop_exit
      _
    %401 = vsyncpa [#allocation3], 1
    %s402 = scalar_lea.sflag [#allocation3], 1
    %403 = vsyncpa %s402, 1

</llo_original>
